<compile_context>
chip_gen: v6e
topology: v6e:2x2x1
jax: 0.10.0
libtpu: 0.0.40
codegen_flags: <defaults>
</compile_context>

<pallas_src>
import functools
import math

import jax
import jax.numpy as jnp
from jax.experimental import pallas as pl
from jax.experimental.pallas import tpu as pltpu

_LN_EPS = 1e-5             # PyTorch nn.LayerNorm default
_MXU_DTYPE = jnp.bfloat16  # MXU operand dtype (weights stored / activations cast)


def _round_up(n, m):
    return ((n + m - 1) // m) * m


def _row_tile(rows, row_tile):
    # Largest multiple-of-8 row tile <= row_tile; ragged last block is masked by Pallas.
    return min(row_tile, _round_up(rows, 8))


def _vmem_limit(nbytes):
    # 2x headroom for compiler temporaries; clamp to [16 MiB, 64 MiB] (v7x physical).
    return int(min(64 * 1024 * 1024, max(16 * 1024 * 1024, 2 * int(nbytes))))


def _itemsize(x):
    return jnp.dtype(x.dtype).itemsize


def _const_spec(shape):
    """BlockSpec for a grid-invariant operand: index_map is constant, single-buffered."""
    nd = len(shape)
    idx = lambda *_: (0,) * nd
    if hasattr(pl, "Buffered"):
        try:
            return pl.BlockSpec(shape, idx, pipeline_mode=pl.Buffered(1))
        except TypeError:  # older JAX without pipeline_mode kwarg
            pass
    return pl.BlockSpec(shape, idx)


# ---------------------------------------------------------------------------
# Kernel 1: fused linear  y = x @ W + b   (bf16 MXU operands, f32 accumulate)
# ---------------------------------------------------------------------------
def _linear_kernel(x_ref, w_ref, b_ref, o_ref, *, mxu_dtype):
    x = x_ref[...].astype(mxu_dtype)
    w = w_ref[...].astype(mxu_dtype)
    y = jnp.dot(x, w, preferred_element_type=jnp.float32)
    o_ref[...] = (y + b_ref[...].astype(jnp.float32)).astype(o_ref.dtype)


def fused_linear(x2d, w, b2d, *, row_tile=512, mxu_dtype=_MXU_DTYPE):
    rows, cin = x2d.shape
    cout = w.shape[1]
    tile = _row_tile(rows, row_tile)
    grid = pl.cdiv(rows, tile)
    vmem = _vmem_limit(2 * tile * cin * _itemsize(x2d)
                       + cin * cout * _itemsize(w) + cout * 4
                       + 2 * tile * cout * _itemsize(x2d)
                       + tile * cout * 4)
    return pl.pallas_call(
        functools.partial(_linear_kernel, mxu_dtype=mxu_dtype),
        out_shape=jax.ShapeDtypeStruct((rows, cout), x2d.dtype),
        grid_spec=pltpu.PrefetchScalarGridSpec(
            num_scalar_prefetch=0,
            grid=(grid,),
            in_specs=[
                pl.BlockSpec((tile, cin), lambda i: (i, 0)),
                _const_spec((cin, cout)),
                _const_spec((1, cout)),
            ],
            out_specs=pl.BlockSpec((tile, cout), lambda i: (i, 0)),
        ),
        compiler_params=pltpu.CompilerParams(
            dimension_semantics=("parallel",), vmem_limit_bytes=vmem),
    )(x2d, w, b2d)


# ---------------------------------------------------------------------------
# Kernel 2: per-batch multi-head attention + out-proj + residual + LayerNorm
#   q3/k3/v3 : (B, L, E) projected activations (lane-dense, batch-major)
#   consts   : [out_proj_bias ; ln_gamma ; ln_beta]  (3, E) f32
# ---------------------------------------------------------------------------
def _attn_block_kernel(q_ref, k_ref, v_ref, res_ref, wo_ref, c_ref, o_ref, *,
                       nheads, scale, eps, mxu_dtype):
    e = q_ref.shape[-1]
    dh = e // nheads
    q = q_ref[0].astype(jnp.float32) * scale          # scale q once (PyTorch convention)
    k = k_ref[0]
    v = v_ref[0]
    # TODO(synk): flash-style KV tiling for long key lengths (full (Lq,Lk) scores here).
    heads = []
    for hh in range(nheads):
        lo = hh * dh
        qh = q[:, lo:lo + dh].astype(mxu_dtype)
        kh = k[:, lo:lo + dh].astype(mxu_dtype)
        vh = v[:, lo:lo + dh].astype(mxu_dtype)
        s = jax.lax.dot_general(qh, kh, (((1,), (1,)), ((), ())),
                                preferred_element_type=jnp.float32)        # (Lq, Lk)
        # TODO(synk): attn_mask / key_padding_mask not applied.
        m = jnp.max(s, axis=-1, keepdims=True)
        p = jnp.exp(s - m)
        denom = jnp.sum(p, axis=-1, keepdims=True)
        oh = jax.lax.dot_general(p.astype(mxu_dtype), vh, (((1,), (0,)), ((), ())),
                                 preferred_element_type=jnp.float32)       # (Lq, Dh)
        # Deferred softmax normalization: reciprocal on the (Lq,1) output, EUP slot.
        heads.append(oh * pl.reciprocal(denom, approx=True))
    attn = jnp.concatenate(heads, axis=-1)                                 # (Lq, E) lane-dense
    c = c_ref[...].astype(jnp.float32)                                     # [bo; gamma; beta]
    y = jax.lax.dot_general(attn.astype(mxu_dtype), wo_ref[...].astype(mxu_dtype),
                            (((1,), (0,)), ((), ())),
                            preferred_element_type=jnp.float32) + c[0:1, :]
    z = y + res_ref[0].astype(jnp.float32)            # dropout1/dropout2 = identity (eval)
    mean = jnp.mean(z, axis=-1, keepdims=True)
    zc = z - mean                                     # centered variance (no cancellation)
    var = jnp.mean(zc * zc, axis=-1, keepdims=True)
    out = zc * jax.lax.rsqrt(var + eps) * c[1:2, :] + c[2:3, :]
    o_ref[0] = out.astype(o_ref.dtype)


def attention_block(q3, k3, v3, res3, wo, consts, *, nheads, scale, mxu_dtype=_MXU_DTYPE):
    bsz, lq, e = q3.shape
    lk = k3.shape[1]
    vmem = _vmem_limit(2 * (2 * lq * e + 2 * lk * e) * 4          # q,res + k,v double-buffered
                       + e * e * _itemsize(wo) + 3 * e * 4        # wo + consts (single)
                       + 2 * lq * e * 4                           # output double-buffered
                       + 3 * lq * lk * 4 + 4 * lq * e * 4)        # score/prob + temporaries
    kernel = functools.partial(_attn_block_kernel, nheads=nheads, scale=scale,
                               eps=_LN_EPS, mxu_dtype=mxu_dtype)
    # NOTE: heads stay an in-kernel loop so out-proj + residual + LN can fuse into the
    # epilogue; the batch axis is "parallel" so steps shard across TensorCores (v7x).
    return pl.pallas_call(
        kernel,
        out_shape=jax.ShapeDtypeStruct((bsz, lq, e), res3.dtype),
        grid_spec=pltpu.PrefetchScalarGridSpec(
            num_scalar_prefetch=0,
            grid=(bsz,),
            in_specs=[
                pl.BlockSpec((1, lq, e), lambda i: (i, 0, 0)),
                pl.BlockSpec((1, lk, e), lambda i: (i, 0, 0)),
                pl.BlockSpec((1, lk, e), lambda i: (i, 0, 0)),
                pl.BlockSpec((1, lq, e), lambda i: (i, 0, 0)),
                _const_spec((e, e)),
                _const_spec((3, e)),
            ],
            out_specs=pl.BlockSpec((1, lq, e), lambda i: (i, 0, 0)),
        ),
        compiler_params=pltpu.CompilerParams(
            dimension_semantics=("parallel",), vmem_limit_bytes=vmem),
    )(q3, k3, v3, res3, wo, consts)


# ---------------------------------------------------------------------------
# Kernel 3: feed-forward (linear1 + act + linear2) + residual + LayerNorm
#   consts = [linear2_bias ; ln_gamma ; ln_beta]  (3, E) f32
# ---------------------------------------------------------------------------
def _ffn_ln_kernel(x_ref, w1_ref, b1_ref, w2_ref, c_ref, o_ref, *, eps, activation, mxu_dtype):
    x = x_ref[...].astype(jnp.float32)
    c = c_ref[...].astype(jnp.float32)
    h = jnp.dot(x.astype(mxu_dtype), w1_ref[...].astype(mxu_dtype),
                preferred_element_type=jnp.float32) + b1_ref[...].astype(jnp.float32)
    if activation == "relu":
        h = jnp.maximum(h, 0.0)
    elif activation == "gelu":
        h = jax.nn.gelu(h, approximate=False)
    else:
        # TODO(synk): 'glu' activation not implemented.
        raise NotImplementedError("activation must be 'relu' or 'gelu'")
    y = jnp.dot(h.astype(mxu_dtype), w2_ref[...].astype(mxu_dtype),
                preferred_element_type=jnp.float32) + c[0:1, :]
    z = y + x                                          # dropout / dropout3 = identity (eval)
    mean = jnp.mean(z, axis=-1, keepdims=True)
    zc = z - mean
    var = jnp.mean(zc * zc, axis=-1, keepdims=True)
    o_ref[...] = (zc * jax.lax.rsqrt(var + eps) * c[1:2, :] + c[2:3, :]).astype(o_ref.dtype)


def ffn_residual_ln(x2d, w1, b1_2d, w2, consts, *, activation="relu", row_tile=512,
                    mxu_dtype=_MXU_DTYPE):
    rows, e = x2d.shape
    f = w1.shape[1]
    tile = _row_tile(rows, row_tile)
    grid = pl.cdiv(rows, tile)
    vmem = _vmem_limit(2 * tile * e * 4
                       + e * f * _itemsize(w1) + f * 4 + f * e * _itemsize(w2) + 3 * e * 4
                       + 2 * tile * e * 4
                       + 2 * tile * f * 4)             # f32 hidden intermediate + bf16 copy
    return pl.pallas_call(
        functools.partial(_ffn_ln_kernel, eps=_LN_EPS, activation=activation,
                          mxu_dtype=mxu_dtype),
        out_shape=jax.ShapeDtypeStruct((rows, e), x2d.dtype),
        grid_spec=pltpu.PrefetchScalarGridSpec(
            num_scalar_prefetch=0,
            grid=(grid,),
            in_specs=[
                pl.BlockSpec((tile, e), lambda i: (i, 0)),
                _const_spec((e, f)),
                _const_spec((1, f)),
                _const_spec((f, e)),
                _const_spec((3, e)),
            ],
            out_specs=pl.BlockSpec((tile, e), lambda i: (i, 0)),
        ),
        compiler_params=pltpu.CompilerParams(
            dimension_semantics=("parallel",), vmem_limit_bytes=vmem),
    )(x2d, w1, b1_2d, w2, consts)


# ---------------------------------------------------------------------------
# Full layer: forward_post (normalize_before=False), eval mode
# ---------------------------------------------------------------------------
def transformer_decoder_layer(tgt, memory, params, *, pos=None, query_pos=None,
                              activation="relu", row_tile=512, mxu_dtype=_MXU_DTYPE):
    l, b, e = tgt.shape
    s = memory.shape[0]
    h = params["nheads"]
    assert e % h == 0
    scale = 1.0 / math.sqrt(e // h)
    sa, ca, ffn = params["self_attn"], params["cross_attn"], params["ffn"]

    wcast = lambda w: w.astype(mxu_dtype)     # weights live in bf16 on the MXU path
    f32 = lambda t: t.astype(jnp.float32)

    # Batch-major (B, L, E) layout for the whole layer -> every Pallas block is
    # lane-dense (last dim = E) and the (B*L, E) flatten is free (no transposes
    # between kernels; only one transpose at layer entry/exit).
    tb = jnp.transpose(tgt, (1, 0, 2))
    mb = jnp.transpose(memory, (1, 0, 2))
    qpb = None if query_pos is None else jnp.transpose(query_pos, (1, 0, 2))
    pb = None if pos is None else jnp.transpose(pos, (1, 0, 2))
    add = lambda x, p: x if p is None else x + p

    # Packed (3, E) constant blocks: [proj_bias ; ln_gamma ; ln_beta]
    n1 = jnp.stack([sa["bo"], params["ln1"]["g"], params["ln1"]["b"]]).astype(jnp.float32)
    n2 = jnp.stack([ca["bo"], params["ln2"]["g"], params["ln2"]["b"]]).astype(jnp.float32)
    n3 = jnp.stack([ffn["b2"], params["ln3"]["g"], params["ln3"]["b"]]).astype(jnp.float32)

    kw = dict(row_tile=row_tile, mxu_dtype=mxu_dtype)

    # ---- self-attention block (+ out-proj + residual + norm1, fused) ----
    qk_in = add(tb, qpb).reshape(b * l, e)
    q2d = fused_linear(qk_in, wcast(sa["wq"]), f32(sa["bq"]).reshape(1, e), **kw)
    k2d = fused_linear(qk_in, wcast(sa["wk"]), f32(sa["bk"]).reshape(1, e), **kw)
    v2d = fused_linear(tb.reshape(b * l, e), wcast(sa["wv"]), f32(sa["bv"]).reshape(1, e), **kw)
    tb = attention_block(q2d.reshape(b, l, e), k2d.reshape(b, l, e), v2d.reshape(b, l, e),
                         tb, wcast(sa["wo"]), n1, nheads=h, scale=scale, mxu_dtype=mxu_dtype)

    # ---- cross-attention block (+ out-proj + residual + norm2, fused) ----
    q_in = add(tb, qpb).reshape(b * l, e)
    k_in = add(mb, pb).reshape(b * s, e)
    q2d = fused_linear(q_in, wcast(ca["wq"]), f32(ca["bq"]).reshape(1, e), **kw)
    k2d = fused_linear(k_in, wcast(ca["wk"]), f32(ca["bk"]).reshape(1, e), **kw)
    v2d = fused_linear(mb.reshape(b * s, e), wcast(ca["wv"]), f32(ca["bv"]).reshape(1, e), **kw)
    tb = attention_block(q2d.reshape(b, l, e), k2d.reshape(b, s, e), v2d.reshape(b, s, e),
                         tb, wcast(ca["wo"]), n2, nheads=h, scale=scale, mxu_dtype=mxu_dtype)

    # ---- feed-forward block (+ residual + norm3, fused) ----
    out2d = ffn_residual_ln(tb.reshape(b * l, e), wcast(ffn["w1"]),
                            f32(ffn["b1"]).reshape(1, -1), wcast(ffn["w2"]), n3,
                            activation=activation, **kw)
    return jnp.transpose(out2d.reshape(b, l, e), (1, 0, 2))


# ---------------------------------------------------------------------------
# Pure-JAX reference (same parameterization: y = x @ W + b).
# matmul_dtype=None      -> full f32 (PyTorch semantics)
# matmul_dtype=bfloat16  -> matched-precision reference for the bf16-MXU kernel
# ---------------------------------------------------------------------------
def _reference_forward_post(tgt, memory, params, pos, query_pos, activation="relu",
                            matmul_dtype=None):
    h = params["nheads"]
    l, b, e = tgt.shape
    s = memory.shape[0]
    dh = e // h
    scale = 1.0 / math.sqrt(dh)

    def mm(a, w):
        if matmul_dtype is not None:
            a, w = a.astype(matmul_dtype), w.astype(matmul_dtype)
        return jnp.dot(a, w, preferred_element_type=jnp.float32)

    def emm(eq, a, w):
        if matmul_dtype is not None:
            a, w = a.astype(matmul_dtype), w.astype(matmul_dtype)
        return jnp.einsum(eq, a, w, preferred_element_type=jnp.float32)

    def ln(x, p):
        m = jnp.mean(x, -1, keepdims=True)
        v = jnp.mean((x - m) ** 2, -1, keepdims=True)
        return (x - m) / jnp.sqrt(v + _LN_EPS) * p["g"] + p["b"]

    def mha(q_in, k_in, v_in, ap, lq, lk):
        q = (mm(q_in.reshape(-1, e), ap["wq"]) + ap["bq"]).reshape(lq, b, h, dh).transpose(1, 2, 0, 3)
        k = (mm(k_in.reshape(-1, e), ap["wk"]) + ap["bk"]).reshape(lk, b, h, dh).transpose(1, 2, 0, 3)
        v = (mm(v_in.reshape(-1, e), ap["wv"]) + ap["bv"]).reshape(lk, b, h, dh).transpose(1, 2, 0, 3)
        sc = emm("bhqd,bhkd->bhqk", q * scale, k)
        pr = jax.nn.softmax(sc, axis=-1)
        o = emm("bhqk,bhkd->bhqd", pr, v)
        o = o.transpose(2, 0, 1, 3).reshape(lq * b, e)
        return (mm(o, ap["wo"]) + ap["bo"]).reshape(lq, b, e)

    withpos = lambda t, p_: t if p_ is None else t + p_

    t2 = mha(withpos(tgt, query_pos), withpos(tgt, query_pos), tgt, params["self_attn"], l, l)
    t = ln(tgt + t2, params["ln1"])
    t2 = mha(withpos(t, query_pos), withpos(memory, pos), memory, params["cross_attn"], l, s)
    t = ln(t + t2, params["ln2"])
    f = params["ffn"]
    hmid = mm(t.reshape(-1, e), f["w1"]) + f["b1"]
    hmid = jnp.maximum(hmid, 0.0) if activation == "relu" else jax.nn.gelu(hmid, approximate=False)
    t2 = (mm(hmid, f["w2"]) + f["b2"]).reshape(l, b, e)
    return ln(t + t2, params["ln3"])


if __name__ == "__main__":
    # Small shapes consistent with the module (seq-first layout like nn.MultiheadAttention).
    L, S, B = 8, 16, 2
    d_model, nheads, dim_ff = 64, 4, 128

    key = jax.random.PRNGKey(0)
    keys = iter(jax.random.split(key, 40))

    def nrm(shape, scl=0.1):
        return scl * jax.random.normal(next(keys), shape, dtype=jnp.float32)

    def attn_params():
        return {"wq": nrm((d_model, d_model)), "bq": nrm((d_model,)),
                "wk": nrm((d_model, d_model)), "bk": nrm((d_model,)),
                "wv": nrm((d_model, d_model)), "bv": nrm((d_model,)),
                "wo": nrm((d_model, d_model)), "bo": nrm((d_model,))}

    params = {
        "nheads": nheads,
        "self_attn": attn_params(),
        "cross_attn": attn_params(),
        "ffn": {"w1": nrm((d_model, dim_ff)), "b1": nrm((dim_ff,)),
                "w2": nrm((dim_ff, d_model)), "b2": nrm((d_model,))},
        "ln1": {"g": 1.0 + nrm((d_model,)), "b": nrm((d_model,))},
        "ln2": {"g": 1.0 + nrm((d_model,)), "b": nrm((d_model,))},
        "ln3": {"g": 1.0 + nrm((d_model,)), "b": nrm((d_model,))},
    }

    tgt = jax.random.normal(next(keys), (L, B, d_model), dtype=jnp.float32)
    memory = jax.random.normal(next(keys), (S, B, d_model), dtype=jnp.float32)
    query_pos = 0.1 * jax.random.normal(next(keys), (L, B, d_model), dtype=jnp.float32)
    pos = 0.1 * jax.random.normal(next(keys), (S, B, d_model), dtype=jnp.float32)

    out = transformer_decoder_layer(tgt, memory, params, pos=pos, query_pos=query_pos,
                                    activation="relu", row_tile=512)
    out = jax.block_until_ready(out)
    assert out.shape == (L, B, d_model), out.shape

    # Tight check vs. a matched-precision reference (bf16 MXU operands, f32 accumulate).
    ref_bf16 = _reference_forward_post(tgt, memory, params, pos, query_pos, "relu",
                                       matmul_dtype=jnp.bfloat16)
    err_matched = float(jnp.max(jnp.abs(out - ref_bf16)))
    assert err_matched < 2e-2, err_matched

    # Loose sanity check vs. the full-f32 reference (difference = bf16 MXU rounding only).
    with jax.default_matmul_precision("highest"):
        ref_f32 = _reference_forward_post(tgt, memory, params, pos, query_pos, "relu")
    err_f32 = float(jnp.max(jnp.abs(out - ref_f32)))
    assert err_f32 < 1e-1, err_f32

    print("KERNEL_OK")
</pallas_src>

<mosaic_0001>
module attributes {stable_mosaic.version = 11 : i64} {
  func.func @_linear_kernel(%arg0: i32, %arg1: memref<16x64xf32, #tpu.memory_space<vmem>>, %arg2: memref<64x64xbf16, #tpu.memory_space<vmem>>, %arg3: memref<1x64xf32, #tpu.memory_space<vmem>>, %arg4: memref<16x64xf32, #tpu.memory_space<vmem>>) attributes {dimension_semantics = [#tpu.dimension_semantics<parallel>], iteration_bounds = array<i64: 1>, scalar_prefetch = 0 : i64, scratch_operands = 0 : i64, tpu.core_type = #tpu.core_type<tc>, window_params = [{transform_indices = @transform_0, window_bounds = array<i64: 16, 64>}, {pipeline_mode = #tpu.pipeline_mode<synchronous>, transform_indices = @transform_1, window_bounds = array<i64: 64, 64>}, {pipeline_mode = #tpu.pipeline_mode<synchronous>, transform_indices = @transform_2, window_bounds = array<i64: 1, 64>}, {transform_indices = @transform_3, window_bounds = array<i64: 16, 64>}]} {
    %c0 = arith.constant 0 : index
    %c0_0 = arith.constant 0 : index
    %0 = vector.load %arg1[%c0, %c0_0] : memref<16x64xf32, #tpu.memory_space<vmem>>, vector<16x64xf32>
    %1 = arith.truncf %0 : vector<16x64xf32> to vector<16x64xbf16>
    %c0_1 = arith.constant 0 : index
    %c0_2 = arith.constant 0 : index
    %2 = vector.load %arg2[%c0_1, %c0_2] : memref<64x64xbf16, #tpu.memory_space<vmem>>, vector<64x64xbf16>
    %cst = arith.constant dense<0.000000e+00> : vector<16x64xf32>
    %3 = tpu.matmul %1, %2, %cst {dimension_numbers = #tpu.dot_dimension_numbers<[1], [0], [0], [1], [0, 0, 1, 1], [], []>} : vector<16x64xbf16>, vector<64x64xbf16>, vector<16x64xf32> -> vector<16x64xf32>
    %c0_3 = arith.constant 0 : index
    %c0_4 = arith.constant 0 : index
    %4 = vector.load %arg3[%c0_3, %c0_4] : memref<1x64xf32, #tpu.memory_space<vmem>>, vector<1x64xf32>
    %5 = vector.broadcast %4 : vector<1x64xf32> to vector<16x64xf32>
    %6 = arith.addf %3, %5 : vector<16x64xf32>
    %c0_5 = arith.constant 0 : index
    %c0_6 = arith.constant 0 : index
    %7 = vector.load %arg4[%c0_5, %c0_6] : memref<16x64xf32, #tpu.memory_space<vmem>>, vector<16x64xf32>
    tpu.vector_store %arg4[%c0_5, %c0_6], %6 {strides = array<i32>} : memref<16x64xf32, #tpu.memory_space<vmem>>, vector<16x64xf32>,
    return
  }
  func.func @transform_0(%arg0: i32) -> (i32, i32) {
    %c0_i32 = arith.constant 0 : i32
    %c0_i32_0 = arith.constant 0 : i32
    return %arg0, %c0_i32 : i32, i32
  }
  func.func @transform_1(%arg0: i32) -> (i32, i32) {
    %c0_i32 = arith.constant 0 : i32
    %c0_i32_0 = arith.constant 0 : i32
    %c0_i32_1 = arith.constant 0 : i32
    return %c0_i32, %c0_i32_0 : i32, i32
  }
  func.func @transform_2(%arg0: i32) -> (i32, i32) {
    %c0_i32 = arith.constant 0 : i32
    %c0_i32_0 = arith.constant 0 : i32
    %c0_i32_1 = arith.constant 0 : i32
    return %c0_i32, %c0_i32_0 : i32, i32
  }
  func.func @transform_3(%arg0: i32) -> (i32, i32) {
    %c0_i32 = arith.constant 0 : i32
    %c0_i32_0 = arith.constant 0 : i32
    return %arg0, %c0_i32 : i32, i32
  }
}

</mosaic_0001>

<llo_original>
// kernel: tpu_custom_call.1
$region0: #{tpu_custom_call.1}
  #allocation0 [shape = 'u32[]', space=smem, size = 0x4, offset = 0x4, fixed_abs, tag = 'smem constant byte address 0x4 - core index']
  #allocation1 [shape = 'u32[144,128]{1,0:T(1,128)}', space=vmem, size = 0x12000, scoped, tag = 'internal scratch']
  %s0 = inlined_call_operand.hbm [shape: f32[16,64], index: 0, kind: input, shape index: {}]
  %s1 = inlined_call_operand.hbm [shape: bf16[64,64], index: 1, kind: input, shape index: {}]
  %s2 = inlined_call_operand.vmem [shape: f32[1,64], index: 2, kind: input, shape index: {}]
  %s3 = inlined_call_operand.hbm [shape: f32[16,64], index: 3, kind: output, shape index: {}]
  %s4 = sld [smem:[#allocation0]]
  $region30: #{tpu_custom_call.1} parent=0
    _
  %s6 = ssub.s32 1, %s4
  %s7 = scalar_select 0, %s6, %s4
  $region1: #{tpu_custom_call.1} parent=0
    #allocation2 [shape = 'u8[8192]{0}', space=vmem, size = 0x2000, scoped, tag = 'input window, operand 0, single buffered']
    #allocation3 [shape = 's32[1]{0}', space=sflag, size = 0x4, scoped, tag = 'scoped memory for tpu_custom_call.1']
    #allocation4 [shape = 's32[1]{0}', space=sflag, size = 0x4, scoped, tag = 'scoped memory for tpu_custom_call.1']
    #allocation5 [shape = 'u8[16384]{0}', space=vmem, size = 0x4000, scoped, tag = 'input window, operand 1, single buffered']
    #allocation6 [shape = 's32[1]{0}', space=sflag, size = 0x4, scoped, tag = 'scoped memory for tpu_custom_call.1']
    #allocation7 [shape = 'u8[8192]{0}', space=vmem, size = 0x2000, scoped, tag = 'output window, operand 0, single buffered']
    %8 = vsyncpa [#allocation3], 0
    %9 = vsyncpa [#allocation6], 0
    %10 = vsyncpa [#allocation4], 0
    // Predicated region
    $region2: #{tpu_custom_call.1} parent=1 // pred_check
      _
    $region3: #{tpu_custom_call.1} parent=1 // pred_check_branch
      %12 = sbr.rel (0) target = $region5
    $region4: #{tpu_custom_call.1} parent=1 // pred_region
      %s14 = ssub.s32 256, 256
      %15 = vsyncadd [#allocation3], %s14
      %s16 = sshll.u32 [#allocation2], 4
      %s17 = int_to_ptr.vmem [resolvable:$true] %s16
      %22 = dma.hbm_to_vmem [thread:$0]  %s0, 256, %s17, [#allocation3], 128, 128, 8
    $region5: #{tpu_custom_call.1} parent=1 // pred_fallthru
      _
    // Predicated region
    $region6: #{tpu_custom_call.1} parent=1 // pred_check
      _
    $region7: #{tpu_custom_call.1} parent=1 // pred_check_branch
      %24 = sbr.rel (0) target = $region9
    $region8: #{tpu_custom_call.1} parent=1 // pred_region
      %s26 = ssub.s32 512, 512
      %27 = vsyncadd [#allocation6], %s26
      %s28 = sshll.u32 [#allocation5], 4
      %s29 = int_to_ptr.vmem [resolvable:$true] %s28
      %34 = dma.hbm_to_vmem [thread:$0]  %s1, 512, %s29, [#allocation6], 64, 64, 4
    $region9: #{tpu_custom_call.1} parent=1 // pred_fallthru
      _
    // Predicated region
    $region10: #{tpu_custom_call.1} parent=1 // pred_check
      _
    $region11: #{tpu_custom_call.1} parent=1 // pred_check_branch
      %36 = sbr.rel (0) target = $region13
    $region12: #{tpu_custom_call.1} parent=1 // pred_region
      _
    $region13: #{tpu_custom_call.1} parent=1 // pred_fallthru
      _
    // Predicated region
    $region14: #{tpu_custom_call.1} parent=1 // pred_check
      _
    $region15: #{tpu_custom_call.1} parent=1 // pred_check_branch
      %38 = sbr.rel (0) target = $region17
    $region16: #{tpu_custom_call.1} parent=1 // pred_region
      %39 = dma.done [#allocation3], 256
    $region17: #{tpu_custom_call.1} parent=1 // pred_fallthru
      _
    // Predicated region
    $region18: #{tpu_custom_call.1} parent=1 // pred_check
      _
    $region19: #{tpu_custom_call.1} parent=1 // pred_check_branch
      %41 = sbr.rel (0) target = $region21
    $region20: #{tpu_custom_call.1} parent=1 // pred_region
      %42 = dma.done [#allocation6], 512
    $region21: #{tpu_custom_call.1} parent=1 // pred_fallthru
      _
    %v44 = vld [vmem:[#allocation2] sm:$0xff]
    %v45 = vld [vmem:[#allocation2 + $0x8] sm:$0xff]
    %v46 = vpack.c.bf16 %v45, %v44
    %v47 = vld [vmem:[#allocation5] sm:$0xf]
    %v48 = vld [vmem:[#allocation5 + $0x4] sm:$0xf]
    %v49 = vld [vmem:[#allocation5 + $0x8] sm:$0xf]
    %v50 = vld [vmem:[#allocation5 + $0xc] sm:$0xf]
    %v51 = vld [vmem:[#allocation5 + $0x10] sm:$0xf]
    %v52 = vld [vmem:[#allocation5 + $0x14] sm:$0xf]
    %v53 = vld [vmem:[#allocation5 + $0x18] sm:$0xf]
    %v54 = vld [vmem:[#allocation5 + $0x1c] sm:$0xf]
    %v55 = vld [vmem:[%s2] sm:$0x1]
    %v57 = vlaneseq
    %v58 = vshrl.u32 %v57, 7
    %v59 = vsub.s32 0, %v58
    %v60 = vrot.slane %v55, %v59
    %v70 = vunpack.c.l.b16 %v47
    %v71 = vunpack.c.l.b16 %v48
    %v72 = vunpack.c.l.b16 %v49
    %v73 = vunpack.c.l.b16 %v50
    %v74 = vunpack.c.l.b16 %v51
    %v75 = vunpack.c.l.b16 %v52
    %v76 = vunpack.c.l.b16 %v53
    %v77 = vunpack.c.l.b16 %v54
    %v78 = vpack.c.b16 %v71, %v70
    %v79 = vpack.c.b16 %v73, %v72
    %v80 = vpack.c.b16 %v75, %v74
    %v81 = vpack.c.b16 %v77, %v76
    %vm86 = vcmask 523264
    %v88 = vsel %vm86, %v46, 0
    %90 = vmatprep.subr.bf16.mxu0 0
    %91 = vmatpush1.bf16.msra.mxu0 0
    %92 = vmatprep.subr.bf16.mxu0 0
    %93 = vmatpush1.bf16.msra.mxu0 0
    %94 = vmatprep.subr.bf16.mxu0 0
    %95 = vmatpush1.bf16.msra.mxu0 0
    %96 = vmatprep.subr.bf16.mxu0 0
    %97 = vmatpush1.bf16.msra.mxu0 0
    %98 = vmatprep.subr.bf16.mxu0 0
    %99 = vmatpush1.bf16.msra.mxu0 %v81
    %100 = vmatprep.subr.bf16.mxu0 0
    %101 = vmatpush1.bf16.msra.mxu0 %v80
    %102 = vmatprep.subr.bf16.mxu0 0
    %103 = vmatpush1.bf16.msra.mxu0 %v79
    %104 = vmatprep.subr.bf16.mxu0 0
    %105 = vmatpush1.bf16.msra.mxu0 %v78
    %106 = vmatprep.subr.bf16.mxu0 0
    %107 = vmatpush2.bf16.msra.mxu0 0
    %108 = vmatprep.subr.bf16.mxu0 0
    %109 = vmatpush2.bf16.msra.mxu0 0
    %110 = vmatprep.subr.bf16.mxu0 0
    %111 = vmatpush2.bf16.msra.mxu0 0
    %112 = vmatprep.subr.bf16.mxu0 0
    %113 = vmatpush2.bf16.msra.mxu0 0
    %114 = vmatprep.subr.bf16.mxu0 0
    %115 = vmatpush2.bf16.msra.mxu0 0
    %116 = vmatprep.subr.bf16.mxu0 0
    %117 = vmatpush2.bf16.msra.mxu0 0
    %118 = vmatprep.subr.bf16.mxu0 0
    %119 = vmatpush2.bf16.msra.mxu0 0
    %120 = vmatprep.subr.bf16.mxu0 0
    %121 = vmatpush2.bf16.msra.mxu0 0
    %122 = vmatprep.mubr.bf16.mxu0 0
    %123 = vmatmul.mubr.bf16.gmra.mxu0 %v88
    %v124 = vpop.f32.mrf.mxu0
    %v125 = vadd.f32 %v60, %v124
    %v126 = vpop.f32.mrf.mxu0
    %v127 = vpop.f32.mrf.mxu0
    %v128 = vadd.f32 %v60, %v127
    %v129 = vpop.f32.mrf.mxu0
    %130 = vdwg.mxu0
    %131 = vst.msk [vmem:[#allocation7] sm:$0xff] %vm86, %v125
    %132 = vst.msk [vmem:[#allocation7 + $0x8] sm:$0xff] %vm86, %v128
    // Predicated region
    $region22: #{tpu_custom_call.1} parent=1 // pred_check
      _
    $region23: #{tpu_custom_call.1} parent=1 // pred_check_branch
      %134 = sbr.rel (0) target = $region25
    $region24: #{tpu_custom_call.1} parent=1 // pred_region
      %s136 = ssub.s32 256, 256
      %137 = vsyncadd [#allocation4], %s136
      %s138 = sshll.u32 [#allocation7], 4
      %s139 = int_to_ptr.vmem [resolvable:$true] %s138
      %144 = dma.vmem_to_hbm [thread:$0]  %s139, 256, %s3, [#allocation4], 128, 128, 8
    $region25: #{tpu_custom_call.1} parent=1 // pred_fallthru
      _
    // Predicated region
    $region26: #{tpu_custom_call.1} parent=1 // pred_check
      _
    $region27: #{tpu_custom_call.1} parent=1 // pred_check_branch
      %146 = sbr.rel (0) target = $region29
    $region28: #{tpu_custom_call.1} parent=1 // pred_region
      %147 = dma.done [#allocation4], 256
    $region29: #{tpu_custom_call.1} parent=1 // pred_fallthru
      _
    %148 = vsyncpa [#allocation3], 1
    %149 = vsyncpa [#allocation6], 1
    %150 = vsyncpa [#allocation4], 1

</llo_original>
